<compile_context>
chip_gen: v5e
topology: v5e:2x2
jax: 0.10.0
libtpu: 0.0.40
codegen_flags: <defaults>
</compile_context>

<pallas_src>
import functools

import jax
import jax.numpy as jnp
from jax import lax
from jax.experimental import pallas as pl
from jax.experimental.pallas import tpu as pltpu


def _round_up(x, m):
    return ((x + m - 1) // m) * m


def _mnrl_kernel(a_ref, b_ref, invb_ref, out_ref,
                 fa_sc, m_sc, s_sc, t_sc, *,
                 scale, space, do_norm, mask_cols, nb_valid, tm, tn):
    i = pl.program_id(0)          # anchor-row tile
    j = pl.program_id(1)          # candidate-column tile (reduction axis)
    nj = pl.num_programs(1)

    a = a_ref[...]                # (TM, D)  original dtype (bf16 stays bf16 on the MXU)
    b = b_ref[...]                # (TN, D)

    # ---- per-anchor-tile init: runs once, on the first column tile ----
    @pl.when(j == 0)
    def _():
        if do_norm:
            # scale / max(||a_i||, 1e-12), via EUP rsqrt; `scale` folded in so the
            # (TM, TN) score tile only needs one multiply per normalization factor.
            ns = jnp.sum(a.astype(jnp.float32) ** 2, axis=1, keepdims=True)
            fa_sc[...] = scale * lax.rsqrt(jnp.maximum(ns, 1e-24))
        else:
            fa_sc[...] = jnp.full((tm, 1), scale, jnp.float32)
        m_sc[...] = jnp.full((tm, 1), -jnp.inf, jnp.float32)
        s_sc[...] = jnp.zeros((tm, 1), jnp.float32)
        t_sc[...] = jnp.zeros((tm, 1), jnp.float32)

    # ---- raw logits on the MXU: contract last dims of both tiles (no b.T copy) ----
    raw = lax.dot_general(a, b, (((1,), (1,)), ((), ())),
                          preferred_element_type=jnp.float32)      # (TM, TN) f32
    scores = raw * fa_sc[...]                                      # scale * inv||a||
    if do_norm:
        scores = scores * invb_ref[...]                            # (1, TN) inv||b||

    col = lax.broadcasted_iota(jnp.int32, (tm, tn), 1) + j * tn
    if mask_cols:
        # padded candidate columns must not contribute to the logsumexp
        scores = jnp.where(col < nb_valid, scores, -jnp.inf)

    # ---- target logit: column (global_row * space). Only the column tiles that can
    #      actually contain targets for this row tile do the masked pick. ----
    row = lax.broadcasted_iota(jnp.int32, (tm, 1), 0) + i * tm
    tcol = row * space
    lo = (i * tm) * space
    hi = (i * tm + tm - 1) * space

    @pl.when(jnp.logical_and(hi >= j * tn, lo < (j + 1) * tn))
    def _():
        t_sc[...] += jnp.sum(jnp.where(col == tcol, scores, 0.0),
                             axis=1, keepdims=True)

    # ---- online-softmax (streaming logsumexp) update ----
    m_prev = m_sc[...]
    m_new = jnp.maximum(m_prev, jnp.max(scores, axis=1, keepdims=True))
    alpha = jnp.exp(m_prev - m_new)
    s_sc[...] = alpha * s_sc[...] + jnp.sum(jnp.exp(scores - m_new),
                                            axis=1, keepdims=True)
    m_sc[...] = m_new

    # ---- finalize: per-row cross-entropy = logsumexp - target ----
    @pl.when(j == nj - 1)
    def _():
        out_ref[...] = jnp.log(s_sc[...]) + m_sc[...] - t_sc[...]


def mnrl_loss(reps_a, reps_b, scale=20.0, score="cos_sim"):
    """Pallas implementation of MultipleNegativesRankingLoss.forward (single device)."""
    if score not in ("cos_sim", "dot"):
        raise ValueError(f"Unsupported score function: {score}")
    na, d = reps_a.shape
    nb, d2 = reps_b.shape
    assert d == d2, "feature dims must match"
    assert nb % na == 0, "reps_b rows must be an integer multiple of reps_a rows"
    space = nb // na
    do_norm = (score == "cos_sim")

    # ---- tiling / padding --------------------------------------------------
    d_pad = _round_up(d, 128)                                   # lane-dense contraction dim
    tm = 128 if na >= 128 else _round_up(na, 8)                 # anchor-row tile
    na_pad = _round_up(na, tm)
    tn = min(512, _round_up(nb, 128)) if nb >= 128 else _round_up(nb, 8)
    nb_pad = _round_up(nb, tn)

    a_p = jnp.pad(reps_a, ((0, na_pad - na), (0, d_pad - d)))
    b_p = jnp.pad(reps_b, ((0, nb_pad - nb), (0, d_pad - d)))

    # Candidate-side inverse norms computed once (O(Nb*D)) instead of redundantly per
    # anchor tile inside the kernel; matmul operands stay in their original dtype.
    if do_norm:
        bn_sq = jnp.sum(b_p.astype(jnp.float32) ** 2, axis=1)
        inv_b = lax.rsqrt(jnp.maximum(bn_sq, 1e-24)).reshape(1, nb_pad)
    else:
        inv_b = jnp.ones((1, nb_pad), jnp.float32)

    kernel = functools.partial(
        _mnrl_kernel, scale=float(scale), space=int(space), do_norm=do_norm,
        mask_cols=(nb_pad != nb), nb_valid=int(nb), tm=int(tm), tn=int(tn))

    row_losses = pl.pallas_call(
        kernel,
        out_shape=jax.ShapeDtypeStruct((na_pad, 1), jnp.float32),
        grid_spec=pltpu.PrefetchScalarGridSpec(
            num_scalar_prefetch=0,
            grid=(na_pad // tm, nb_pad // tn),
            in_specs=[
                pl.BlockSpec((tm, d_pad), lambda i, j: (i, 0)),   # anchors
                pl.BlockSpec((tn, d_pad), lambda i, j: (j, 0)),   # candidates
                pl.BlockSpec((1, tn), lambda i, j: (0, j)),       # candidate inv-norms
            ],
            out_specs=pl.BlockSpec((tm, 1), lambda i, j: (i, 0)),
            scratch_shapes=[
                pltpu.VMEM((tm, 1), jnp.float32),   # fa: scale * inv||a||
                pltpu.VMEM((tm, 1), jnp.float32),   # m : running max
                pltpu.VMEM((tm, 1), jnp.float32),   # s : running sum-exp
                pltpu.VMEM((tm, 1), jnp.float32),   # t : target logit
            ],
        ),
        compiler_params=pltpu.CompilerParams(
            dimension_semantics=("parallel", "arbitrary")),
    )(a_p, b_p, inv_b)

    # padded anchor rows are sliced away before the mean
    return jnp.mean(row_losses[:na, 0])


def _mnrl_ref(reps_a, reps_b, scale=20.0, score="cos_sim"):
    """Plain-JAX reference of the PyTorch forward (single device)."""
    a = reps_a.astype(jnp.float32)
    b = reps_b.astype(jnp.float32)
    if score == "cos_sim":
        a = a / jnp.maximum(jnp.linalg.norm(a, axis=1, keepdims=True), 1e-12)
        b = b / jnp.maximum(jnp.linalg.norm(b, axis=1, keepdims=True), 1e-12)
    scores = (a @ b.T) * scale
    space = b.shape[0] // a.shape[0]
    labels = jnp.arange(a.shape[0]) * space
    lse = jax.scipy.special.logsumexp(scores, axis=1)
    tgt = scores[jnp.arange(a.shape[0]), labels]
    return jnp.mean(lse - tgt)


if __name__ == "__main__":
    key = jax.random.PRNGKey(0)

    # Case 1: tiny single-tile problem (8 anchors, each with 1 positive + 1 hard neg).
    ka, kb = jax.random.split(key)
    a1 = jax.random.normal(ka, (8, 32), dtype=jnp.float32)
    b1 = jax.random.normal(kb, (16, 32), dtype=jnp.float32)
    out1 = mnrl_loss(a1, b1, scale=20.0, score="cos_sim")
    jax.block_until_ready(out1)
    ref1 = _mnrl_ref(a1, b1, scale=20.0)
    assert jnp.allclose(out1, ref1, rtol=1e-3, atol=1e-3), (out1, ref1)

    # Case 2: exercises row tiling (Na=160 -> 2x128 tiles), D padding (40 -> 128),
    # Nb padding (640 -> 1024 with -inf column masking) and the per-tile target pick.
    kc, kd = jax.random.split(kb)
    a2 = jax.random.normal(kc, (160, 40), dtype=jnp.float32)
    b2 = jax.random.normal(kd, (640, 40), dtype=jnp.float32)
    out2 = mnrl_loss(a2, b2, scale=20.0, score="cos_sim")
    jax.block_until_ready(out2)
    ref2 = _mnrl_ref(a2, b2, scale=20.0)
    assert jnp.allclose(out2, ref2, rtol=1e-3, atol=1e-3), (out2, ref2)

    print("KERNEL_OK")
</pallas_src>

<mosaic_0001>
module attributes {stable_mosaic.version = 11 : i64} {
  func.func @_mnrl_kernel(%arg0: i32, %arg1: i32, %arg2: memref<8x128xf32, #tpu.memory_space<vmem>>, %arg3: memref<16x128xf32, #tpu.memory_space<vmem>>, %arg4: memref<1x16xf32, #tpu.memory_space<vmem>>, %arg5: memref<8x1xf32, #tpu.memory_space<vmem>>, %arg6: memref<8x1xf32, #tpu.memory_space<vmem>>, %arg7: memref<8x1xf32, #tpu.memory_space<vmem>>, %arg8: memref<8x1xf32, #tpu.memory_space<vmem>>, %arg9: memref<8x1xf32, #tpu.memory_space<vmem>>) attributes {dimension_semantics = [#tpu.dimension_semantics<parallel>, #tpu.dimension_semantics<arbitrary>], iteration_bounds = array<i64: 1, 1>, scalar_prefetch = 0 : i64, scratch_operands = 4 : i64, tpu.core_type = #tpu.core_type<tc>, window_params = [{transform_indices = @transform_0, window_bounds = array<i64: 8, 128>}, {transform_indices = @transform_1, window_bounds = array<i64: 16, 128>}, {transform_indices = @transform_2, window_bounds = array<i64: 1, 16>}, {transform_indices = @transform_3, window_bounds = array<i64: 8, 1>}]} {
    %c0 = arith.constant 0 : index
    %c0_0 = arith.constant 0 : index
    %0 = vector.load %arg2[%c0, %c0_0] : memref<8x128xf32, #tpu.memory_space<vmem>>, vector<8x128xf32>
    %c0_1 = arith.constant 0 : index
    %c0_2 = arith.constant 0 : index
    %1 = vector.load %arg3[%c0_1, %c0_2] : memref<16x128xf32, #tpu.memory_space<vmem>>, vector<16x128xf32>
    %c0_i32 = arith.constant 0 : i32
    %2 = arith.cmpi eq, %arg1, %c0_i32 : i32
    %3 = arith.extui %2 : i1 to i32
    %c0_i32_3 = arith.constant 0 : i32
    %4 = arith.cmpi ne, %3, %c0_i32_3 : i32
    scf.if %4 {
      %55 = arith.mulf %0, %0 : vector<8x128xf32>
      %cst_29 = arith.constant dense<0.000000e+00> : vector<8xf32>
      %56 = vector.multi_reduction <add>, %55, %cst_29 [1] : vector<8x128xf32> to vector<8xf32>
      %57 = vector.shape_cast %56 : vector<8xf32> to vector<8x1xf32>
      %cst_30 = arith.constant 1.000000e-24 : f32
      %58 = vector.broadcast %cst_30 : f32 to vector<8x1xf32>
      %59 = arith.maximumf %57, %58 : vector<8x1xf32>
      %60 = math.rsqrt %59 : vector<8x1xf32>
      %cst_31 = arith.constant 2.000000e+01 : f32
      %61 = vector.broadcast %cst_31 : f32 to vector<8x1xf32>
      %62 = arith.mulf %61, %60 : vector<8x1xf32>
      %c0_32 = arith.constant 0 : index
      %c0_33 = arith.constant 0 : index
      %63 = vector.load %arg6[%c0_32, %c0_33] : memref<8x1xf32, #tpu.memory_space<vmem>>, vector<8x1xf32>
      tpu.vector_store %arg6[%c0_32, %c0_33], %62 {strides = array<i32>} : memref<8x1xf32, #tpu.memory_space<vmem>>, vector<8x1xf32>,
      %cst_34 = arith.constant 0xFF800000 : f32
      %64 = vector.broadcast %cst_34 : f32 to vector<8x1xf32>
      %c0_35 = arith.constant 0 : index
      %c0_36 = arith.constant 0 : index
      %65 = vector.load %arg7[%c0_35, %c0_36] : memref<8x1xf32, #tpu.memory_space<vmem>>, vector<8x1xf32>
      tpu.vector_store %arg7[%c0_35, %c0_36], %64 {strides = array<i32>} : memref<8x1xf32, #tpu.memory_space<vmem>>, vector<8x1xf32>,
      %cst_37 = arith.constant 0.000000e+00 : f32
      %66 = vector.broadcast %cst_37 : f32 to vector<8x1xf32>
      %c0_38 = arith.constant 0 : index
      %c0_39 = arith.constant 0 : index
      %67 = vector.load %arg8[%c0_38, %c0_39] : memref<8x1xf32, #tpu.memory_space<vmem>>, vector<8x1xf32>
      tpu.vector_store %arg8[%c0_38, %c0_39], %66 {strides = array<i32>} : memref<8x1xf32, #tpu.memory_space<vmem>>, vector<8x1xf32>,
      %cst_40 = arith.constant 0.000000e+00 : f32
      %68 = vector.broadcast %cst_40 : f32 to vector<8x1xf32>
      %c0_41 = arith.constant 0 : index
      %c0_42 = arith.constant 0 : index
      %69 = vector.load %arg9[%c0_41, %c0_42] : memref<8x1xf32, #tpu.memory_space<vmem>>, vector<8x1xf32>
      tpu.vector_store %arg9[%c0_41, %c0_42], %68 {strides = array<i32>} : memref<8x1xf32, #tpu.memory_space<vmem>>, vector<8x1xf32>,
    } else {
    }
    %cst = arith.constant dense<0.000000e+00> : vector<8x16xf32>
    %5 = tpu.matmul %0, %1, %cst {dimension_numbers = #tpu.dot_dimension_numbers<[1], [1], [0], [0], [0, 0, 1, 0], [], []>} : vector<8x128xf32>, vector<16x128xf32>, vector<8x16xf32> -> vector<8x16xf32>
    %c0_4 = arith.constant 0 : index
    %c0_5 = arith.constant 0 : index
    %6 = vector.load %arg6[%c0_4, %c0_5] : memref<8x1xf32, #tpu.memory_space<vmem>>, vector<8x1xf32>
    %7 = vector.broadcast %6 : vector<8x1xf32> to vector<8x16xf32>
    %8 = arith.mulf %5, %7 : vector<8x16xf32>
    %c0_6 = arith.constant 0 : index
    %c0_7 = arith.constant 0 : index
    %9 = vector.load %arg4[%c0_6, %c0_7] : memref<1x16xf32, #tpu.memory_space<vmem>>, vector<1x16xf32>
    %10 = vector.broadcast %9 : vector<1x16xf32> to vector<8x16xf32>
    %11 = arith.mulf %8, %10 : vector<8x16xf32>
    %12 = tpu.iota {dimensions = array<i32: 1>} : vector<8x16xi32>
    %c16_i32 = arith.constant 16 : i32
    %13 = arith.muli %arg1, %c16_i32 : i32
    %14 = vector.broadcast %13 : i32 to vector<8x16xi32>
    %15 = arith.addi %12, %14 : vector<8x16xi32>
    %16 = tpu.iota {dimensions = array<i32: 0>} : vector<8x1xi32>
    %c8_i32 = arith.constant 8 : i32
    %17 = arith.muli %arg0, %c8_i32 : i32
    %18 = vector.broadcast %17 : i32 to vector<8x1xi32>
    %19 = arith.addi %16, %18 : vector<8x1xi32>
    %c2_i32 = arith.constant 2 : i32
    %20 = vector.broadcast %c2_i32 : i32 to vector<8x1xi32>
    %21 = arith.muli %19, %20 : vector<8x1xi32>
    %c8_i32_8 = arith.constant 8 : i32
    %22 = arith.muli %arg0, %c8_i32_8 : i32
    %c2_i32_9 = arith.constant 2 : i32
    %23 = arith.muli %22, %c2_i32_9 : i32
    %c8_i32_10 = arith.constant 8 : i32
    %24 = arith.muli %arg0, %c8_i32_10 : i32
    %c8_i32_11 = arith.constant 8 : i32
    %25 = arith.addi %24, %c8_i32_11 : i32
    %c1_i32 = arith.constant 1 : i32
    %26 = arith.subi %25, %c1_i32 : i32
    %c2_i32_12 = arith.constant 2 : i32
    %27 = arith.muli %26, %c2_i32_12 : i32
    %c16_i32_13 = arith.constant 16 : i32
    %28 = arith.muli %arg1, %c16_i32_13 : i32
    %29 = arith.cmpi sge, %27, %28 : i32
    %c1_i32_14 = arith.constant 1 : i32
    %30 = arith.addi %arg1, %c1_i32_14 : i32
    %c16_i32_15 = arith.constant 16 : i32
    %31 = arith.muli %30, %c16_i32_15 : i32
    %32 = arith.cmpi slt, %23, %31 : i32
    %33 = arith.andi %29, %32 : i1
    %34 = arith.extui %33 : i1 to i32
    %c0_i32_16 = arith.constant 0 : i32
    %35 = arith.cmpi ne, %34, %c0_i32_16 : i32
    scf.if %35 {
      %c0_29 = arith.constant 0 : index
      %c0_30 = arith.constant 0 : index
      %55 = vector.load %arg9[%c0_29, %c0_30] : memref<8x1xf32, #tpu.memory_space<vmem>>, vector<8x1xf32>
      %56 = vector.broadcast %21 : vector<8x1xi32> to vector<8x16xi32>
      %57 = arith.cmpi eq, %15, %56 : vector<8x16xi32>
      %cst_31 = arith.constant 0.000000e+00 : f32
      %58 = vector.broadcast %cst_31 : f32 to vector<8x16xf32>
      %59 = arith.select %57, %11, %58 : vector<8x16xi1>, vector<8x16xf32>
      %cst_32 = arith.constant dense<0.000000e+00> : vector<8xf32>
      %60 = vector.multi_reduction <add>, %59, %cst_32 [1] : vector<8x16xf32> to vector<8xf32>
      %61 = vector.shape_cast %60 : vector<8xf32> to vector<8x1xf32>
      %62 = arith.addf %55, %61 : vector<8x1xf32>
      %c0_33 = arith.constant 0 : index
      %c0_34 = arith.constant 0 : index
      %63 = vector.load %arg9[%c0_33, %c0_34] : memref<8x1xf32, #tpu.memory_space<vmem>>, vector<8x1xf32>
      tpu.vector_store %arg9[%c0_33, %c0_34], %62 {strides = array<i32>} : memref<8x1xf32, #tpu.memory_space<vmem>>, vector<8x1xf32>,
    } else {
    }
    %c0_17 = arith.constant 0 : index
    %c0_18 = arith.constant 0 : index
    %36 = vector.load %arg7[%c0_17, %c0_18] : memref<8x1xf32, #tpu.memory_space<vmem>>, vector<8x1xf32>
    %cst_19 = arith.constant dense<0xFF800000> : vector<8xf32>
    %37 = vector.multi_reduction <maximumf>, %11, %cst_19 [1] : vector<8x16xf32> to vector<8xf32>
    %38 = vector.shape_cast %37 : vector<8xf32> to vector<8x1xf32>
    %39 = arith.maximumf %36, %38 : vector<8x1xf32>
    %40 = arith.subf %36, %39 : vector<8x1xf32>
    %41 = math.exp %40 : vector<8x1xf32>
    %c0_20 = arith.constant 0 : index
    %c0_21 = arith.constant 0 : index
    %42 = vector.load %arg8[%c0_20, %c0_21] : memref<8x1xf32, #tpu.memory_space<vmem>>, vector<8x1xf32>
    %43 = arith.mulf %41, %42 : vector<8x1xf32>
    %44 = vector.broadcast %39 : vector<8x1xf32> to vector<8x16xf32>
    %45 = arith.subf %11, %44 : vector<8x16xf32>
    %46 = math.exp %45 : vector<8x16xf32>
    %cst_22 = arith.constant dense<0.000000e+00> : vector<8xf32>
    %47 = vector.multi_reduction <add>, %46, %cst_22 [1] : vector<8x16xf32> to vector<8xf32>
    %48 = vector.shape_cast %47 : vector<8xf32> to vector<8x1xf32>
    %49 = arith.addf %43, %48 : vector<8x1xf32>
    %c0_23 = arith.constant 0 : index
    %c0_24 = arith.constant 0 : index
    %50 = vector.load %arg8[%c0_23, %c0_24] : memref<8x1xf32, #tpu.memory_space<vmem>>, vector<8x1xf32>
    tpu.vector_store %arg8[%c0_23, %c0_24], %49 {strides = array<i32>} : memref<8x1xf32, #tpu.memory_space<vmem>>, vector<8x1xf32>,
    %c0_25 = arith.constant 0 : index
    %c0_26 = arith.constant 0 : index
    %51 = vector.load %arg7[%c0_25, %c0_26] : memref<8x1xf32, #tpu.memory_space<vmem>>, vector<8x1xf32>
    tpu.vector_store %arg7[%c0_25, %c0_26], %39 {strides = array<i32>} : memref<8x1xf32, #tpu.memory_space<vmem>>, vector<8x1xf32>,
    %c0_i32_27 = arith.constant 0 : i32
    %52 = arith.cmpi eq, %arg1, %c0_i32_27 : i32
    %53 = arith.extui %52 : i1 to i32
    %c0_i32_28 = arith.constant 0 : i32
    %54 = arith.cmpi ne, %53, %c0_i32_28 : i32
    scf.if %54 {
      %c0_29 = arith.constant 0 : index
      %c0_30 = arith.constant 0 : index
      %55 = vector.load %arg8[%c0_29, %c0_30] : memref<8x1xf32, #tpu.memory_space<vmem>>, vector<8x1xf32>
      %56 = math.log %55 : vector<8x1xf32>
      %c0_31 = arith.constant 0 : index
      %c0_32 = arith.constant 0 : index
      %57 = vector.load %arg7[%c0_31, %c0_32] : memref<8x1xf32, #tpu.memory_space<vmem>>, vector<8x1xf32>
      %58 = arith.addf %56, %57 : vector<8x1xf32>
      %c0_33 = arith.constant 0 : index
      %c0_34 = arith.constant 0 : index
      %59 = vector.load %arg9[%c0_33, %c0_34] : memref<8x1xf32, #tpu.memory_space<vmem>>, vector<8x1xf32>
      %60 = arith.subf %58, %59 : vector<8x1xf32>
      %c0_35 = arith.constant 0 : index
      %c0_36 = arith.constant 0 : index
      %61 = vector.load %arg5[%c0_35, %c0_36] : memref<8x1xf32, #tpu.memory_space<vmem>>, vector<8x1xf32>
      tpu.vector_store %arg5[%c0_35, %c0_36], %60 {strides = array<i32>} : memref<8x1xf32, #tpu.memory_space<vmem>>, vector<8x1xf32>,
    } else {
    }
    return
  }
  func.func @transform_0(%arg0: i32, %arg1: i32) -> (i32, i32) {
    %c0_i32 = arith.constant 0 : i32
    %c0_i32_0 = arith.constant 0 : i32
    return %arg0, %c0_i32 : i32, i32
  }
  func.func @transform_1(%arg0: i32, %arg1: i32) -> (i32, i32) {
    %c0_i32 = arith.constant 0 : i32
    %c0_i32_0 = arith.constant 0 : i32
    return %arg1, %c0_i32 : i32, i32
  }
  func.func @transform_2(%arg0: i32, %arg1: i32) -> (i32, i32) {
    %c0_i32 = arith.constant 0 : i32
    %c0_i32_0 = arith.constant 0 : i32
    return %c0_i32, %arg1 : i32, i32
  }
  func.func @transform_3(%arg0: i32, %arg1: i32) -> (i32, i32) {
    %c0_i32 = arith.constant 0 : i32
    %c0_i32_0 = arith.constant 0 : i32
    return %arg0, %c0_i32 : i32, i32
  }
}

</mosaic_0001>

<llo_original>
// kernel: tpu_custom_call.1
$region0: #{tpu_custom_call.1}
  #allocation0 [shape = 'u32[]', space=smem, size = 0x4, offset = 0x4, fixed_abs, tag = 'smem constant byte address 0x4 - core index']
  #allocation1 [shape = 'u32[72,128]{1,0:T(1,128)}', space=vmem, size = 0x9000, scoped, tag = 'internal scratch']
  #allocation2 [shape = 'f32[8,1]{1,0:T(8,128)}', space=vmem, size = 0x1000, scoped, tag = 'scratch operand']
  #allocation3 [shape = 'f32[8,1]{1,0:T(8,128)}', space=vmem, size = 0x1000, scoped, tag = 'scratch operand']
  #allocation4 [shape = 'f32[8,1]{1,0:T(8,128)}', space=vmem, size = 0x1000, scoped, tag = 'scratch operand']
  #allocation5 [shape = 'f32[8,1]{1,0:T(8,128)}', space=vmem, size = 0x1000, scoped, tag = 'scratch operand']
  %s0 = inlined_call_operand.hbm [shape: f32[8,128], index: 0, kind: input, shape index: {}]
  %s1 = inlined_call_operand.hbm [shape: f32[16,128], index: 1, kind: input, shape index: {}]
  %s2 = inlined_call_operand.vmem [shape: f32[1,16], index: 2, kind: input, shape index: {}]
  %s3 = inlined_call_operand.vmem [shape: f32[8,1], index: 3, kind: output, shape index: {}]
  %s4 = sld [smem:[#allocation0]]
  $region42: #{tpu_custom_call.1} parent=0
    _
  %s6 = ssub.s32 1, %s4
  %s7 = scalar_select 0, %s6, %s4
  $region1: #{tpu_custom_call.1} parent=0
    #allocation6 [shape = 'u8[4096]{0}', space=vmem, size = 0x1000, scoped, tag = 'input window, operand 0, single buffered']
    #allocation7 [shape = 's32[1]{0}', space=sflag, size = 0x4, scoped, tag = 'scoped memory for tpu_custom_call.1']
    #allocation8 [shape = 'u8[8192]{0}', space=vmem, size = 0x2000, scoped, tag = 'input window, operand 1, single buffered']
    #allocation9 [shape = 's32[1]{0}', space=sflag, size = 0x4, scoped, tag = 'scoped memory for tpu_custom_call.1']
    %8 = vsyncpa [#allocation7], 0
    %9 = vsyncpa [#allocation9], 0
    // Predicated region
    $region2: #{tpu_custom_call.1} parent=1 // pred_check
      _
    $region3: #{tpu_custom_call.1} parent=1 // pred_check_branch
      %11 = sbr.rel (0) target = $region5
    $region4: #{tpu_custom_call.1} parent=1 // pred_region
      %13 = vsyncadd [#allocation7], 0
      %s15 = sshll.u32 %s0, 4
      %s16 = int_to_ptr.hbm [resolvable:$true] %s15
      %s17 = sshll.u32 [#allocation6], 4
      %s18 = int_to_ptr.vmem [resolvable:$true] %s17
      %20 = dma.hbm_to_vmem [thread:$0]  %s16, 128, %s18, [#allocation7]
    $region5: #{tpu_custom_call.1} parent=1 // pred_fallthru
      _
    // Predicated region
    $region6: #{tpu_custom_call.1} parent=1 // pred_check
      _
    $region7: #{tpu_custom_call.1} parent=1 // pred_check_branch
      %22 = sbr.rel (0) target = $region9
    $region8: #{tpu_custom_call.1} parent=1 // pred_region
      %24 = vsyncadd [#allocation9], 0
      %s25 = sshll.u32 %s1, 4
      %s26 = int_to_ptr.hbm [resolvable:$true] %s25
      %s27 = sshll.u32 [#allocation8], 4
      %s28 = int_to_ptr.vmem [resolvable:$true] %s27
      %33 = dma.hbm_to_vmem [thread:$0]  %s26, 256, %s28, [#allocation9], 128, 128, 8
    $region9: #{tpu_custom_call.1} parent=1 // pred_fallthru
      _
    // Predicated region
    $region10: #{tpu_custom_call.1} parent=1 // pred_check
      _
    $region11: #{tpu_custom_call.1} parent=1 // pred_check_branch
      %35 = sbr.rel (0) target = $region13
    $region12: #{tpu_custom_call.1} parent=1 // pred_region
      _
    $region13: #{tpu_custom_call.1} parent=1 // pred_fallthru
      _
    // Predicated region
    $region14: #{tpu_custom_call.1} parent=1 // pred_check
      _
    $region15: #{tpu_custom_call.1} parent=1 // pred_check_branch
      %37 = sbr.rel (0) target = $region17
    $region16: #{tpu_custom_call.1} parent=1 // pred_region
      %39 = dma.done [#allocation7], 128
    $region17: #{tpu_custom_call.1} parent=1 // pred_fallthru
      _
    // Predicated region
    $region18: #{tpu_custom_call.1} parent=1 // pred_check
      _
    $region19: #{tpu_custom_call.1} parent=1 // pred_check_branch
      %41 = sbr.rel (0) target = $region21
    $region20: #{tpu_custom_call.1} parent=1 // pred_region
      %43 = dma.done [#allocation9], 256
    $region21: #{tpu_custom_call.1} parent=1 // pred_fallthru
      _
    %v44 = vld [vmem:[#allocation6] sm:$0xff]
    %v45 = vld [vmem:[#allocation8] sm:$0xff]
    %v46 = vld [vmem:[#allocation8 + $0x8] sm:$0xff]
    %p47 = scmp.eq.s32.totalorder 0, 0
    // Predicated region
    $region22: #{tpu_custom_call.1} parent=1 // pred_check
      %p48 = pneg %p47
    $region23: #{tpu_custom_call.1} parent=1 // pred_check_branch
      %50 = sbr.rel (%p48) target = $region25
    $region24: #{tpu_custom_call.1} parent=1 // pred_region
      %v51 = vmul.f32 %v44, %v44
      %52 = vadd.xlane.f32.xlu0 %v51
      %v53 = vpop.xlane.xlu0 %52
      %v54 = vmax.f32 %v53, 1e-24
      %v55 = vrsqrt.pop %v54
      %v56 = vmul.f32 %v55, %v54
      %v57 = vmul.f32 %v56, %v55
      %v58 = vmul.f32 0.5, %v57
      %v59 = vsub.f32 1.5, %v58
      %v60 = vmul.f32 %v55, %v59
      %vm61 = vweird.f32 %v54
      %vm62 = vweird.f32 %v55
      %vm63 = vmor %vm61, %vm62
      %v64 = vsel %vm63, %v55, %v60
      %v65 = vmul.f32 %v64, 20.0
      %vm66 = vcmask 7168
      %67 = vst.msk [vmem:[#allocation2] sm:$0xff] %vm66, %v65
      %68 = vst.msk [vmem:[#allocation3] sm:$0xff] %vm66, -inf
      %69 = vst.msk [vmem:[#allocation4] sm:$0xff] %vm66, 0.0
      %70 = vst.msk [vmem:[#allocation5] sm:$0xff] %vm66, 0.0
    $region25: #{tpu_custom_call.1} parent=1 // pred_fallthru
      _
    %71 = vmatpush.xpose.msra.mxu0 0.0
    %72 = vmatpush.xpose.msra.mxu0 0.0
    %73 = vmatpush.xpose.msra.mxu0 0.0
    %74 = vmatpush.xpose.msra.mxu0 0.0
    %75 = vmatpush.xpose.msra.mxu0 0.0
    %76 = vmatpush.xpose.msra.mxu0 0.0
    %77 = vmatpush.xpose.msra.mxu0 0.0
    %78 = vmatpush.xpose.msra.mxu0 0.0
    %79 = vmatpush.xpose.msra.mxu0 0.0
    %80 = vmatpush.xpose.msra.mxu0 0.0
    %81 = vmatpush.xpose.msra.mxu0 0.0
    %82 = vmatpush.xpose.msra.mxu0 0.0
    %83 = vmatpush.xpose.msra.mxu0 0.0
    %84 = vmatpush.xpose.msra.mxu0 0.0
    %85 = vmatpush.xpose.msra.mxu0 %v46
    %86 = vmatpush.xpose.msra.mxu0 %v45
    %87 = vmatmul.f32.gmra.mxu0 %v44
    %v88 = vpop.f32.mrf.mxu0
    %v89 = vadd.f32 0.0, %v88
    %90 = vdwg.mxu0
    %v91 = vld [vmem:[#allocation2] sm:$0xff]
    %93 = vset.pattern.permute.xlu0 0
    %94 = vperm.xlu0 %93, %v91
    %v95 = vpop.permute.xlu0 %94
    %v97 = vmul.f32 %v89, %v95
    %v98 = vld [vmem:[%s2] sm:$0x1]
    %v100 = vperm.slane %v98, 0
    %v102 = vmul.f32 %v97, %v100
    %v103 = vlaneseq
    %v104 = vand.u32 %v103, 127
    %s105 = smul.u32 0, 16
    %v106 = vstv %s105
    %v107 = vadd.s32 %v104, %v106
    %v108 = vlaneseq
    %v109 = vshrl.u32 %v108, 7
    %s110 = smul.u32 0, 8
    %v111 = vstv %s110
    %v112 = vadd.s32 %v109, %v111
    %v113 = vmul.u32 %v112, 2
    %s114 = smul.u32 0, 16
    %s115 = sadd.s32 %s110, 7
    %s116 = smul.u32 %s115, 2
    %p117 = scmp.ge.s32.totalorder %s116, %s105
    %s118 = sadd.s32 0, 1
    %s119 = smul.u32 %s118, 16
    %p120 = scmp.lt.s32.totalorder %s114, %s119
    %p121 = pnand %p117, %p120
    %p122 = pneg %p121
    // Predicated region
    $region26: #{tpu_custom_call.1} parent=1 // pred_check
      _
    $region27: #{tpu_custom_call.1} parent=1 // pred_check_branch
      %124 = sbr.rel (%p121) target = $region29
    $region28: #{tpu_custom_call.1} parent=1 // pred_region
      %v125 = vld [vmem:[#allocation5] sm:$0xff]
      %vm126 = vcmp.eq.s32.totalorder %v107, %v113
      %v127 = vsel %vm126, %v102, 0.0
      %vm128 = vcmask 130048
      %v129 = vsel %vm128, %v127, 0.0
      %130 = vadd.xlane.f32.xlu0 %v129
      %v131 = vpop.xlane.xlu0 %130
      %v132 = vadd.f32 %v125, %v131
      %vm133 = vcmask 7168
      %134 = vst.msk [vmem:[#allocation5] sm:$0xff] %vm133, %v132
    $region29: #{tpu_custom_call.1} parent=1 // pred_fallthru
      _
    %v135 = vld [vmem:[#allocation3] sm:$0xff]
    %vm136 = vcmask 130048
    %v137 = vsel %vm136, %v102, -inf
    %138 = vmax.xlane.f32.xlu0 %v137
    %v139 = vpop.xlane.xlu0 %138
    %v140 = vmax.f32 %v135, %v139
    %v141 = vsub.f32 %v135, %v140
    %v142 = vmul.f32 %v141, 1.442695
    %v143 = vpow.pop %v142
    %v144 = vld [vmem:[#allocation4] sm:$0xff]
    %v145 = vmul.f32 %v143, %v144
    %147 = vset.pattern.permute.xlu0 0
    %148 = vperm.xlu0 %147, %v140
    %v149 = vpop.permute.xlu0 %148
    %v151 = vsub.f32 %v102, %v149
    %v152 = vmul.f32 %v151, 1.442695
    %v153 = vpow.pop %v152
    %v154 = vsel %vm136, %v153, 0.0
    %155 = vadd.xlane.f32.xlu0 %v154
    %v156 = vpop.xlane.xlu0 %155
    %v157 = vadd.f32 %v145, %v156
    %vm158 = vcmask 7168
    %159 = vst.msk [vmem:[#allocation4] sm:$0xff] %vm158, %v157
    %160 = vst.msk [vmem:[#allocation3] sm:$0xff] %vm158, %v140
    // Predicated region
    $region30: #{tpu_custom_call.1} parent=1 // pred_check
      %p161 = pneg %p47
    $region31: #{tpu_custom_call.1} parent=1 // pred_check_branch
      %163 = sbr.rel (%p161) target = $region33
    $region32: #{tpu_custom_call.1} parent=1 // pred_region
      %v164 = vld [vmem:[#allocation4] sm:$0xff]
      %v165 = vlog2.pop %v164
      %v166 = vmul.f32 %v165, 0.6931472
      %v167 = vld [vmem:[#allocation3] sm:$0xff]
      %v168 = vadd.f32 %v166, %v167
      %v169 = vld [vmem:[#allocation5] sm:$0xff]
      %v170 = vsub.f32 %v168, %v169
      %171 = vst.msk [vmem:[%s3] sm:$0xff] %vm158, %v170
    $region33: #{tpu_custom_call.1} parent=1 // pred_fallthru
      _
    // Predicated region
    $region34: #{tpu_custom_call.1} parent=1 // pred_check
      _
    $region35: #{tpu_custom_call.1} parent=1 // pred_check_branch
      %173 = sbr.rel (0) target = $region37
    $region36: #{tpu_custom_call.1} parent=1 // pred_region
      _
    $region37: #{tpu_custom_call.1} parent=1 // pred_fallthru
      _
    // Predicated region
    $region38: #{tpu_custom_call.1} parent=1 // pred_check
      _
    $region39: #{tpu_custom_call.1} parent=1 // pred_check_branch
      %175 = sbr.rel (0) target = $region41
    $region40: #{tpu_custom_call.1} parent=1 // pred_region
      _
    $region41: #{tpu_custom_call.1} parent=1 // pred_fallthru
      _
    %176 = vsyncpa [#allocation7], 1
    %177 = vsyncpa [#allocation9], 1

</llo_original>
